<compile_context>
chip_gen: v7x
topology: tpu7x:2x2x1
jax: 0.10.0
libtpu: 0.0.40
codegen_flags: <defaults>
</compile_context>

<pallas_src>
import functools

import jax
import jax.numpy as jnp
from jax.experimental import pallas as pl
from jax.experimental.pallas import tpu as pltpu


def _make_mish_kernel(use_approx_recip):
    def kernel(x_ref, o_ref):
        x = x_ref[...]
        xf = x.astype(jnp.float32)  # compute in f32; HBM traffic stays in input dtype
        # mish(x) = x * tanh(softplus(x)).  With e = exp(x):
        #   tanh(softplus(x)) = ((1 + e)^2 - 1) / ((1 + e)^2 + 1)
        #                     = e*(e + 2) / (e*(e + 2) + 2)
        # -> one EUP transcendental (exp) + one divide; numerator form avoids
        #    cancellation; exp underflow at very negative x gives exactly 0.
        e = jnp.exp(jnp.minimum(xf, 20.0))      # clamp so e*(e+2) cannot overflow f32
        u = e * (e + 2.0)
        if use_approx_recip:
            # narrow output dtype: approx EUP reciprocal error is far below bf16/fp8 eps
            t = u * pl.reciprocal(u + 2.0, approx=True)
        else:
            t = u / (u + 2.0)
        y = jnp.where(xf > 20.0, xf, xf * t)    # for x > 20, tanh(softplus(x)) == 1
        o_ref[...] = y.astype(o_ref.dtype)
    return kernel


def _mish_2d(x2d, block_bytes, vmem_limit):
    """Run the mish kernel over a (rows, lane) slab; lane must be a multiple of 128."""
    rows, lane = x2d.shape
    dtype = x2d.dtype
    itemsize = jnp.dtype(dtype).itemsize
    # Sublane multiple for this dtype: 8 (f32), 16 (bf16/f16), 32 (8-bit).
    sub = max(8, 32 // itemsize)

    tile_rows = max(sub, (block_bytes // (lane * itemsize)) // sub * sub)
    if tile_rows >= rows:
        if rows >= 4 * sub:
            # >= 4 grid steps so each of v7x's two TensorCores gets >= 2 pipelined
            # steps (restores per-core double-buffering on small/medium inputs).
            tile_rows = ((pl.cdiv(rows, 4) + sub - 1) // sub) * sub
        else:
            tile_rows = rows  # single block == full array extent (always legal)
    grid = (pl.cdiv(rows, tile_rows),)

    n = rows * lane
    cost = pl.CostEstimate(
        flops=6 * n,
        transcendentals=n,
        bytes_accessed=2 * n * itemsize,
    )

    # TODO(synk): if an xprof trace on v7x still shows exposed DMA at this block
    # size, add pipeline_mode=pl.Buffered(3) on the input BlockSpec and re-check
    # VMEM residency against the 64 MiB budget.
    return pl.pallas_call(
        _make_mish_kernel(use_approx_recip=itemsize < 4),
        out_shape=jax.ShapeDtypeStruct((rows, lane), dtype),
        grid_spec=pltpu.PrefetchScalarGridSpec(
            num_scalar_prefetch=0,
            grid=grid,
            in_specs=[pl.BlockSpec((tile_rows, lane), lambda i: (i, 0))],
            out_specs=pl.BlockSpec((tile_rows, lane), lambda i: (i, 0)),
        ),
        compiler_params=pltpu.CompilerParams(
            dimension_semantics=("parallel",),
            vmem_limit_bytes=vmem_limit,
        ),
        cost_estimate=cost,
    )(x2d)


@functools.lru_cache(maxsize=None)
def _chip_params():
    """(block_bytes, vmem_limit_bytes) tuned per TPU generation."""
    block_bytes = 4 * 1024 * 1024  # v5e/v6e: 2 refs x 2 bufs x 4 MiB = 16 MiB resident
    vmem_limit = 32 << 20          # above v5e's 16 MiB scoped default; 128 MiB physical
    try:
        info = pltpu.get_tpu_info()
        vmem_cap = getattr(info, "vmem_capacity_bytes", None)
        if vmem_cap is not None and vmem_cap <= 96 * 1024 * 1024:
            # v7x-class: only 64 MiB VMEM but 3.2 TB/s HBM -> bigger blocks to
            # amortize the ~0.35 us per-step overhead; residency stays ~20 MiB.
            block_bytes = 5 * 1024 * 1024
            vmem_limit = 40 << 20
    except Exception:
        pass  # unknown chip / interpret mode: conservative defaults above
    return block_bytes, vmem_limit


@functools.partial(jax.jit, static_argnames=("block_bytes", "vmem_limit"))
def _mish_impl(x, *, block_bytes, vmem_limit):
    orig_shape = x.shape
    dtype = x.dtype
    n = x.size
    if n == 0:
        return x

    flat = jnp.ravel(x)

    # Lane width: widest multiple of 128 that divides n (lane-dense, unmasked
    # stores, no padding / slicing / extra copies at all).
    lane = next((c for c in (1024, 512, 256, 128) if n % c == 0), None)
    if lane is not None:
        out2d = _mish_2d(flat.reshape(-1, lane), block_bytes, vmem_limit)
        return out2d.reshape(orig_shape)

    # Ragged n: run the 1024-aligned prefix through the kernel (lane stays 1024)
    # and compute the <1024-element tail with plain jnp.  Compared to the old
    # full-array pad + trailing slice this keeps a single extra output-side copy.
    n_main = (n // 1024) * 1024
    tail = flat[n_main:].astype(jnp.float32)
    tail_out = (tail * jnp.tanh(jax.nn.softplus(tail))).astype(dtype)
    if n_main == 0:
        return tail_out.reshape(orig_shape)
    main_out = _mish_2d(flat[:n_main].reshape(-1, 1024), block_bytes, vmem_limit)
    return jnp.concatenate([main_out.reshape(-1), tail_out]).reshape(orig_shape)


def mish(x):
    """Elementwise Mish forward (matches mish_jit_fwd: x * tanh(softplus(x)))."""
    block_bytes, vmem_limit = _chip_params()
    return _mish_impl(x, block_bytes=block_bytes, vmem_limit=vmem_limit)


# TODO(synk): the custom autograd backward (mish_jit_bwd) is not implemented; this
# covers the forward pass only.

if __name__ == "__main__":
    key = jax.random.PRNGKey(0)
    # NCHW input, consistent with a conv activation module
    x = jax.random.normal(key, (2, 4, 16, 16), dtype=jnp.float32) * 3.0

    y = jax.block_until_ready(mish(x))
    ref = x * jnp.tanh(jax.nn.softplus(x))
    assert y.shape == x.shape and y.dtype == x.dtype
    assert jnp.max(jnp.abs(y - ref)) < 1e-5

    # ragged element count (not a multiple of 128) exercises the prefix+tail path
    x2 = jax.random.normal(jax.random.PRNGKey(0), (3, 5, 7, 11), dtype=jnp.float32) * 3.0
    y2 = jax.block_until_ready(mish(x2))
    ref2 = x2 * jnp.tanh(jax.nn.softplus(x2))
    assert y2.shape == x2.shape and jnp.max(jnp.abs(y2 - ref2)) < 1e-5

    # bf16 input exercises the narrow-dtype (approx-reciprocal) path
    x3 = (jax.random.normal(jax.random.PRNGKey(0), (2, 4, 16, 16), dtype=jnp.float32)
          * 3.0).astype(jnp.bfloat16)
    y3 = jax.block_until_ready(mish(x3))
    ref3 = (x3.astype(jnp.float32)
            * jnp.tanh(jax.nn.softplus(x3.astype(jnp.float32)))).astype(jnp.bfloat16)
    assert y3.shape == x3.shape and y3.dtype == jnp.bfloat16
    rel_err = jnp.max(
        jnp.abs(y3.astype(jnp.float32) - ref3.astype(jnp.float32))
        / (1.0 + jnp.abs(ref3.astype(jnp.float32))))
    assert rel_err < 2e-2

    print("KERNEL_OK")
</pallas_src>

<mosaic_0001>
module attributes {stable_mosaic.version = 11 : i64} {
  func.func @kernel(%arg0: i32, %arg1: memref<2x1024xf32, #tpu.memory_space<vmem>>, %arg2: memref<2x1024xf32, #tpu.memory_space<vmem>>) attributes {dimension_semantics = [#tpu.dimension_semantics<parallel>], iteration_bounds = array<i64: 1>, scalar_prefetch = 0 : i64, scratch_operands = 0 : i64, tpu.core_type = #tpu.core_type<tc>, window_params = [{transform_indices = @transform_0, window_bounds = array<i64: 2, 1024>}, {transform_indices = @transform_1, window_bounds = array<i64: 2, 1024>}]} {
    %c0 = arith.constant 0 : index
    %c0_0 = arith.constant 0 : index
    %0 = vector.load %arg1[%c0, %c0_0] : memref<2x1024xf32, #tpu.memory_space<vmem>>, vector<2x1024xf32>
    %cst = arith.constant 2.000000e+01 : f32
    %1 = vector.broadcast %cst : f32 to vector<2x1024xf32>
    %2 = arith.minimumf %0, %1 : vector<2x1024xf32>
    %3 = math.exp %2 : vector<2x1024xf32>
    %cst_1 = arith.constant 2.000000e+00 : f32
    %4 = vector.broadcast %cst_1 : f32 to vector<2x1024xf32>
    %5 = arith.addf %3, %4 : vector<2x1024xf32>
    %6 = arith.mulf %3, %5 : vector<2x1024xf32>
    %cst_2 = arith.constant 2.000000e+00 : f32
    %7 = vector.broadcast %cst_2 : f32 to vector<2x1024xf32>
    %8 = arith.addf %6, %7 : vector<2x1024xf32>
    %9 = arith.divf %6, %8 : vector<2x1024xf32>
    %cst_3 = arith.constant 2.000000e+01 : f32
    %10 = vector.broadcast %cst_3 : f32 to vector<2x1024xf32>
    %11 = arith.cmpf ogt, %0, %10 : vector<2x1024xf32>
    %12 = arith.mulf %0, %9 : vector<2x1024xf32>
    %13 = arith.select %11, %0, %12 : vector<2x1024xi1>, vector<2x1024xf32>
    %c0_4 = arith.constant 0 : index
    %c0_5 = arith.constant 0 : index
    %14 = vector.load %arg2[%c0_4, %c0_5] : memref<2x1024xf32, #tpu.memory_space<vmem>>, vector<2x1024xf32>
    tpu.vector_store %arg2[%c0_4, %c0_5], %13 {strides = array<i32>} : memref<2x1024xf32, #tpu.memory_space<vmem>>, vector<2x1024xf32>,
    return
  }
  func.func @transform_0(%arg0: i32) -> (i32, i32) {
    %c0_i32 = arith.constant 0 : i32
    %c0_i32_0 = arith.constant 0 : i32
    return %arg0, %c0_i32 : i32, i32
  }
  func.func @transform_1(%arg0: i32) -> (i32, i32) {
    %c0_i32 = arith.constant 0 : i32
    %c0_i32_0 = arith.constant 0 : i32
    return %arg0, %c0_i32 : i32, i32
  }
}

</mosaic_0001>

<llo_original>
// kernel: _mish_impl.1
$region0: #{_mish_impl.1}
  #allocation0 [shape = 'u32[]', space=smem, size = 0x4, offset = 0x4, fixed_abs, tag = 'smem constant byte address 0x4 - core index']
  #allocation1 [shape = 'u32[144,128]{1,0:T(1,128)}', space=vmem, size = 0x12000, scoped, tag = 'internal scratch']
  %s0 = inlined_call_operand.vmem [shape: f32[2,1024], index: 0, kind: input, shape index: {}]
  %s1 = inlined_call_operand.vmem [shape: f32[2,1024], index: 1, kind: output, shape index: {}]
  %s2 = sld [smem:[#allocation0]]
  $region14: #{_mish_impl.1} parent=0
    _
  %s4 = ssub.s32 1, %s2
  %s5 = scalar_select 0, %s4, %s2
  // Predicated region
  $region2: #{_mish_impl.1} parent=0 // pred_check
    _
  $region3: #{_mish_impl.1} parent=0 // pred_check_branch
    %7 = sbr.rel (0) target = $region5
  $region4: #{_mish_impl.1} parent=0 // pred_region
    _
  $region5: #{_mish_impl.1} parent=0 // pred_fallthru
    _
  %v8 = vld [vmem:[%s0] sm:$0xff]
  %v9 = vld [vmem:[%s0 + $0x8] sm:$0xff]
  %v10 = vmin.f32 %v8, 20.0
  %v11 = vmin.f32 %v9, 20.0
  %v12 = vmul.f32 %v10, 1.442695
  %v13 = vpow.pop %v12
  %v14 = vmul.f32 %v11, 1.442695
  %v15 = vpow.pop %v14
  %v16 = vadd.f32 %v13, 2.0
  %v17 = vadd.f32 %v15, 2.0
  %v18 = vmul.f32 %v13, %v16
  %v19 = vmul.f32 %v15, %v17
  %v20 = vadd.f32 %v18, 2.0
  %v21 = vadd.f32 %v19, 2.0
  %v22 = vrcp.pop %v20
  %v23 = vmul.f32 %v18, %v22
  %v24 = vrcp.pop %v21
  %v25 = vmul.f32 %v19, %v24
  %vm26 = vcmp.gt.f32.partialorder %v8, 20.0
  %vm27 = vcmp.gt.f32.partialorder %v9, 20.0
  %v28 = vmul.f32 %v8, %v23
  %v29 = vmul.f32 %v9, %v25
  %v30 = vsel %vm26, %v8, %v28
  %v31 = vsel %vm27, %v9, %v29
  %32 = vst [vmem:[%s1] sm:$0xff] %v30
  %33 = vst [vmem:[%s1 + $0x8] sm:$0xff] %v31
  // Predicated region
  $region6: #{_mish_impl.1} parent=0 // pred_check
    _
  $region7: #{_mish_impl.1} parent=0 // pred_check_branch
    %35 = sbr.rel (0) target = $region9
  $region8: #{_mish_impl.1} parent=0 // pred_region
    _
  $region9: #{_mish_impl.1} parent=0 // pred_fallthru
    _
  // Predicated region
  $region10: #{_mish_impl.1} parent=0 // pred_check
    _
  $region11: #{_mish_impl.1} parent=0 // pred_check_branch
    %37 = sbr.rel (0) target = $region13
  $region12: #{_mish_impl.1} parent=0 // pred_region
    _
  $region13: #{_mish_impl.1} parent=0 // pred_fallthru
    _

</llo_original>
